<compile_context>
chip_gen: v6e
topology: v6e:2x2x1
jax: 0.10.0
libtpu: 0.0.40
codegen_flags: <defaults>
</compile_context>

<pallas_src>
import jax
import jax.numpy as jnp
from jax import lax
from jax.experimental import pallas as pl
from jax.experimental.pallas import tpu as pltpu


def _rnn_cell_kernel(x_ref, h0_ref, wih_ref, whh_ref, bias_ref, out_ref, hN_ref):
    """x_ref: (T*B, I) time-major-flattened input, h0_ref: (B, H),
    wih_ref: (H, I) and whh_ref: (H, H) in PyTorch RNNCell layout,
    bias_ref: (1, H) = b_ih + b_hh,
    out_ref: (T, B, H) per-step hidden states, hN_ref: (B, H) final hidden."""
    B, H = h0_ref.shape
    TB, _ = x_ref.shape
    T = TB // B  # static

    # Hoisted input projection for every timestep at once, contracting on the
    # shared input dim (x @ W_ih^T) so no wrapper-side transpose is needed.
    xw = lax.dot_general(
        x_ref[...], wih_ref[...],
        dimension_numbers=(((1,), (1,)), ((), ())),
        preferred_element_type=jnp.float32) + bias_ref[...]        # (T*B, H)

    whh = whh_ref[...]                                             # resident (H, H)
    h = h0_ref[...]                                                # (B, H) in vregs

    # Static, fully unrolled recurrence (T=2 per the module's forward).
    for t in range(T):
        hw = lax.dot_general(                                      # h @ W_hh^T
            h, whh,
            dimension_numbers=(((1,), (1,)), ((), ())),
            preferred_element_type=jnp.float32)
        h = jnp.tanh(xw[t * B:(t + 1) * B, :] + hw)
        out_ref[t] = h                                             # per-step output

    hN_ref[...] = h                                                # final hidden, from vregs


@jax.jit
def clean_basic_rnn_forward(x, h0, w_ih, w_hh, b_ih, b_hh):
    """x: (T, B, I) with T == 2 (the module indexes X[0], X[1]).
    h0: (B, H) initial hidden state (the module's self.hx).
    Weights in PyTorch RNNCell convention: w_ih (H, I), w_hh (H, H), b_* (H,).
    Returns (outputs (T, B, H), final_hidden (B, H))."""
    T, B, I = x.shape
    H = w_hh.shape[0]

    x_flat = x.reshape(T * B, I).astype(jnp.float32)               # time-major flat
    bias = (b_ih + b_hh).reshape(1, H).astype(jnp.float32)         # fused bias

    vmem = pl.BlockSpec(memory_space=pltpu.MemorySpace.VMEM)
    outs, h_final = pl.pallas_call(
        _rnn_cell_kernel,
        out_shape=(jax.ShapeDtypeStruct((T, B, H), jnp.float32),
                   jax.ShapeDtypeStruct((B, H), jnp.float32)),
        in_specs=[vmem, vmem, vmem, vmem, vmem],
        out_specs=(vmem, vmem),
    )(x_flat, h0.astype(jnp.float32), w_ih.astype(jnp.float32),
      w_hh.astype(jnp.float32), bias)

    return outs, h_final


def _reference_forward(x, h0, w_ih, w_hh, b_ih, b_hh):
    """Pure-JAX reference mirroring the PyTorch module."""
    h = h0.astype(jnp.float32)
    outs = []
    for t in range(x.shape[0]):
        h = jnp.tanh(x[t] @ w_ih.T + b_ih + h @ w_hh.T + b_hh)
        outs.append(h)
    return jnp.stack(outs), h


if __name__ == "__main__":
    # Small shapes consistent with the module's forward (loops over X[0], X[1]).
    batch_size, n_inputs, n_neurons, n_steps = 8, 16, 32, 2

    key = jax.random.PRNGKey(0)
    kx, kh, k1, k2, k3, k4 = jax.random.split(key, 6)

    x = jax.random.normal(kx, (n_steps, batch_size, n_inputs), jnp.float32)
    h0 = jax.random.normal(kh, (batch_size, n_neurons), jnp.float32)  # self.hx

    # PyTorch-style uniform(-1/sqrt(H), 1/sqrt(H)) init, deterministic.
    s = 1.0 / (n_neurons ** 0.5)
    w_ih = jax.random.uniform(k1, (n_neurons, n_inputs), jnp.float32, -s, s)
    w_hh = jax.random.uniform(k2, (n_neurons, n_neurons), jnp.float32, -s, s)
    b_ih = jax.random.uniform(k3, (n_neurons,), jnp.float32, -s, s)
    b_hh = jax.random.uniform(k4, (n_neurons,), jnp.float32, -s, s)

    outs, h_final = clean_basic_rnn_forward(x, h0, w_ih, w_hh, b_ih, b_hh)
    outs = jax.block_until_ready(outs)
    h_final = jax.block_until_ready(h_final)

    ref_outs, ref_h = _reference_forward(x, h0, w_ih, w_hh, b_ih, b_hh)
    assert outs.shape == (n_steps, batch_size, n_neurons)
    assert h_final.shape == (batch_size, n_neurons)
    assert jnp.allclose(outs, ref_outs, atol=1e-5, rtol=1e-5), (
        f"outputs mismatch: max abs err {jnp.max(jnp.abs(outs - ref_outs))}")
    assert jnp.allclose(h_final, ref_h, atol=1e-5, rtol=1e-5), (
        f"final hidden mismatch: max abs err {jnp.max(jnp.abs(h_final - ref_h))}")

    print("KERNEL_OK")
</pallas_src>

<mosaic_0001>
module attributes {stable_mosaic.version = 11 : i64} {
  func.func @_rnn_cell_kernel(%arg0: memref<16x16xf32, #tpu.memory_space<vmem>>, %arg1: memref<8x32xf32, #tpu.memory_space<vmem>>, %arg2: memref<32x16xf32, #tpu.memory_space<vmem>>, %arg3: memref<32x32xf32, #tpu.memory_space<vmem>>, %arg4: memref<1x32xf32, #tpu.memory_space<vmem>>, %arg5: memref<2x8x32xf32, #tpu.memory_space<vmem>>, %arg6: memref<8x32xf32, #tpu.memory_space<vmem>>) attributes {dimension_semantics = [], scalar_prefetch = 0 : i64, scratch_operands = 0 : i64, tpu.core_type = #tpu.core_type<tc>} {
    %c0 = arith.constant 0 : index
    %c0_0 = arith.constant 0 : index
    %0 = vector.load %arg0[%c0, %c0_0] : memref<16x16xf32, #tpu.memory_space<vmem>>, vector<16x16xf32>
    %c0_1 = arith.constant 0 : index
    %c0_2 = arith.constant 0 : index
    %1 = vector.load %arg2[%c0_1, %c0_2] : memref<32x16xf32, #tpu.memory_space<vmem>>, vector<32x16xf32>
    %cst = arith.constant dense<0.000000e+00> : vector<16x32xf32>
    %2 = tpu.matmul %0, %1, %cst {dimension_numbers = #tpu.dot_dimension_numbers<[1], [1], [0], [0], [0, 0, 1, 0], [], []>} : vector<16x16xf32>, vector<32x16xf32>, vector<16x32xf32> -> vector<16x32xf32>
    %c0_3 = arith.constant 0 : index
    %c0_4 = arith.constant 0 : index
    %3 = vector.load %arg4[%c0_3, %c0_4] : memref<1x32xf32, #tpu.memory_space<vmem>>, vector<1x32xf32>
    %4 = vector.broadcast %3 : vector<1x32xf32> to vector<16x32xf32>
    %5 = arith.addf %2, %4 : vector<16x32xf32>
    %c0_5 = arith.constant 0 : index
    %c0_6 = arith.constant 0 : index
    %6 = vector.load %arg3[%c0_5, %c0_6] : memref<32x32xf32, #tpu.memory_space<vmem>>, vector<32x32xf32>
    %c0_7 = arith.constant 0 : index
    %c0_8 = arith.constant 0 : index
    %7 = vector.load %arg1[%c0_7, %c0_8] : memref<8x32xf32, #tpu.memory_space<vmem>>, vector<8x32xf32>
    %cst_9 = arith.constant dense<0.000000e+00> : vector<8x32xf32>
    %8 = tpu.matmul %7, %6, %cst_9 {dimension_numbers = #tpu.dot_dimension_numbers<[1], [1], [0], [0], [0, 0, 1, 0], [], []>} : vector<8x32xf32>, vector<32x32xf32>, vector<8x32xf32> -> vector<8x32xf32>
    %9 = vector.extract_strided_slice %5 {offsets = [0, 0], sizes = [8, 32], strides = [1, 1]} : vector<16x32xf32> to vector<8x32xf32>
    %10 = arith.addf %9, %8 : vector<8x32xf32>
    %11 = math.tanh %10 : vector<8x32xf32>
    %c0_10 = arith.constant 0 : index
    %c0_11 = arith.constant 0 : index
    %c0_12 = arith.constant 0 : index
    %12 = vector.load %arg5[%c0_10, %c0_11, %c0_12] : memref<2x8x32xf32, #tpu.memory_space<vmem>>, vector<1x8x32xf32>
    %13 = vector.shape_cast %12 : vector<1x8x32xf32> to vector<8x32xf32>
    %14 = vector.shape_cast %11 : vector<8x32xf32> to vector<1x8x32xf32>
    tpu.vector_store %arg5[%c0_10, %c0_11, %c0_12], %14 {strides = array<i32>} : memref<2x8x32xf32, #tpu.memory_space<vmem>>, vector<1x8x32xf32>,
    %cst_13 = arith.constant dense<0.000000e+00> : vector<8x32xf32>
    %15 = tpu.matmul %11, %6, %cst_13 {dimension_numbers = #tpu.dot_dimension_numbers<[1], [1], [0], [0], [0, 0, 1, 0], [], []>} : vector<8x32xf32>, vector<32x32xf32>, vector<8x32xf32> -> vector<8x32xf32>
    %16 = vector.extract_strided_slice %5 {offsets = [8, 0], sizes = [8, 32], strides = [1, 1]} : vector<16x32xf32> to vector<8x32xf32>
    %17 = arith.addf %16, %15 : vector<8x32xf32>
    %18 = math.tanh %17 : vector<8x32xf32>
    %c1 = arith.constant 1 : index
    %c0_14 = arith.constant 0 : index
    %c0_15 = arith.constant 0 : index
    %19 = vector.load %arg5[%c1, %c0_14, %c0_15] : memref<2x8x32xf32, #tpu.memory_space<vmem>>, vector<1x8x32xf32>
    %20 = vector.shape_cast %19 : vector<1x8x32xf32> to vector<8x32xf32>
    %21 = vector.shape_cast %18 : vector<8x32xf32> to vector<1x8x32xf32>
    tpu.vector_store %arg5[%c1, %c0_14, %c0_15], %21 {strides = array<i32>} : memref<2x8x32xf32, #tpu.memory_space<vmem>>, vector<1x8x32xf32>,
    %c0_16 = arith.constant 0 : index
    %c0_17 = arith.constant 0 : index
    %22 = vector.load %arg6[%c0_16, %c0_17] : memref<8x32xf32, #tpu.memory_space<vmem>>, vector<8x32xf32>
    tpu.vector_store %arg6[%c0_16, %c0_17], %18 {strides = array<i32>} : memref<8x32xf32, #tpu.memory_space<vmem>>, vector<8x32xf32>,
    return
  }
}

</mosaic_0001>

<llo_original>
// kernel: clean_basic_rnn_forward.1
$region0: #{clean_basic_rnn_forward.1}
  #allocation0 [shape = 'u32[]', space=smem, size = 0x4, offset = 0x4, fixed_abs, tag = 'smem constant byte address 0x4 - core index']
  #allocation1 [shape = 'u32[144,128]{1,0:T(1,128)}', space=vmem, size = 0x12000, scoped, tag = 'internal scratch']
  %s0 = inlined_call_operand.vmem [shape: f32[16,16], index: 0, kind: input, shape index: {}]
  %s1 = inlined_call_operand.vmem [shape: f32[8,32], index: 1, kind: input, shape index: {}]
  %s2 = inlined_call_operand.vmem [shape: f32[32,16], index: 2, kind: input, shape index: {}]
  %s3 = inlined_call_operand.vmem [shape: f32[32,32], index: 3, kind: input, shape index: {}]
  %s4 = inlined_call_operand.vmem [shape: f32[1,32], index: 4, kind: input, shape index: {}]
  %s5 = inlined_call_operand.hbm [shape: f32[2,8,32], index: 5, kind: output, shape index: {0}]
  %s6 = inlined_call_operand.hbm [shape: f32[8,32], index: 6, kind: output, shape index: {1}]
  %7 = xla_tuple %s5, %s6
  %s8 = sld [smem:[#allocation0]]
  $region38: #{clean_basic_rnn_forward.1} parent=0
    _
  %s10 = ssub.s32 1, %s8
  %s11 = scalar_select 0, %s10, %s8
  $region1: #{clean_basic_rnn_forward.1} parent=0
    #allocation2 [shape = 'u8[8192]{0}', space=vmem, size = 0x2000, scoped, tag = 'output window, operand 0, single buffered']
    #allocation3 [shape = 's32[1]{0}', space=sflag, size = 0x4, scoped, tag = 'scoped memory for clean_basic_rnn_forward.1']
    #allocation4 [shape = 'u8[4096]{0}', space=vmem, size = 0x1000, scoped, tag = 'output window, operand 1, single buffered']
    #allocation5 [shape = 's32[1]{0}', space=sflag, size = 0x4, scoped, tag = 'scoped memory for clean_basic_rnn_forward.1']
    %12 = vsyncpa [#allocation3], 0
    %13 = vsyncpa [#allocation5], 0
    // Predicated region
    $region2: #{clean_basic_rnn_forward.1} parent=1 // pred_check
      _
    $region3: #{clean_basic_rnn_forward.1} parent=1 // pred_check_branch
      %15 = sbr.rel (0) target = $region5
    $region4: #{clean_basic_rnn_forward.1} parent=1 // pred_region
      _
    $region5: #{clean_basic_rnn_forward.1} parent=1 // pred_fallthru
      _
    // Predicated region
    $region6: #{clean_basic_rnn_forward.1} parent=1 // pred_check
      _
    $region7: #{clean_basic_rnn_forward.1} parent=1 // pred_check_branch
      %17 = sbr.rel (0) target = $region9
    $region8: #{clean_basic_rnn_forward.1} parent=1 // pred_region
      _
    $region9: #{clean_basic_rnn_forward.1} parent=1 // pred_fallthru
      _
    // Predicated region
    $region10: #{clean_basic_rnn_forward.1} parent=1 // pred_check
      _
    $region11: #{clean_basic_rnn_forward.1} parent=1 // pred_check_branch
      %19 = sbr.rel (0) target = $region13
    $region12: #{clean_basic_rnn_forward.1} parent=1 // pred_region
      _
    $region13: #{clean_basic_rnn_forward.1} parent=1 // pred_fallthru
      _
    // Predicated region
    $region14: #{clean_basic_rnn_forward.1} parent=1 // pred_check
      _
    $region15: #{clean_basic_rnn_forward.1} parent=1 // pred_check_branch
      %21 = sbr.rel (0) target = $region17
    $region16: #{clean_basic_rnn_forward.1} parent=1 // pred_region
      _
    $region17: #{clean_basic_rnn_forward.1} parent=1 // pred_fallthru
      _
    // Predicated region
    $region18: #{clean_basic_rnn_forward.1} parent=1 // pred_check
      _
    $region19: #{clean_basic_rnn_forward.1} parent=1 // pred_check_branch
      %23 = sbr.rel (0) target = $region21
    $region20: #{clean_basic_rnn_forward.1} parent=1 // pred_region
      _
    $region21: #{clean_basic_rnn_forward.1} parent=1 // pred_fallthru
      _
    %v24 = vld [vmem:[%s0] sm:$0xff]
    %v25 = vld [vmem:[%s0 + $0x8] sm:$0xff]
    %v26 = vld [vmem:[%s2] sm:$0xff]
    %v27 = vld [vmem:[%s2 + $0x8] sm:$0xff]
    %v28 = vld [vmem:[%s2 + $0x10] sm:$0xff]
    %v29 = vld [vmem:[%s2 + $0x18] sm:$0xff]
    %v30 = vld [vmem:[%s4] sm:$0x1]
    %v32 = vlaneseq
    %v33 = vshrl.u32 %v32, 7
    %v34 = vsub.s32 0, %v33
    %v35 = vrot.slane %v30, %v34
    %vm37 = vcmask 130048
    %v39 = vsel %vm37, %v24, 0
    %v42 = vsel %vm37, %v25, 0
    %v45 = vsel %vm37, %v26, 0
    %v48 = vsel %vm37, %v27, 0
    %v51 = vsel %vm37, %v28, 0
    %v54 = vsel %vm37, %v29, 0
    %56 = vmatprep.subr.mxu0 0.0
    %57 = vmatpush1.xpose.msra.mxu0 0.0
    %58 = vmatprep.subr.mxu0 0.0
    %59 = vmatpush1.xpose.msra.mxu0 0.0
    %60 = vmatprep.subr.mxu0 0.0
    %61 = vmatpush1.xpose.msra.mxu0 0.0
    %62 = vmatprep.subr.mxu0 0.0
    %63 = vmatpush1.xpose.msra.mxu0 0.0
    %64 = vmatprep.subr.mxu0 0.0
    %65 = vmatpush1.xpose.msra.mxu0 0.0
    %66 = vmatprep.subr.mxu0 0.0
    %67 = vmatpush1.xpose.msra.mxu0 0.0
    %68 = vmatprep.subr.mxu0 0.0
    %69 = vmatpush1.xpose.msra.mxu0 0.0
    %70 = vmatprep.subr.mxu0 0.0
    %71 = vmatpush1.xpose.msra.mxu0 0.0
    %72 = vmatprep.subr.mxu0 0.0
    %73 = vmatpush1.xpose.msra.mxu0 0.0
    %74 = vmatprep.subr.mxu0 0.0
    %75 = vmatpush1.xpose.msra.mxu0 0.0
    %76 = vmatprep.subr.mxu0 0.0
    %77 = vmatpush1.xpose.msra.mxu0 0.0
    %78 = vmatprep.subr.mxu0 0.0
    %79 = vmatpush1.xpose.msra.mxu0 0.0
    %80 = vmatprep.subr.mxu0 0.0
    %81 = vmatpush1.xpose.msra.mxu0 %v54
    %82 = vmatprep.subr.mxu0 0.0
    %83 = vmatpush1.xpose.msra.mxu0 %v51
    %84 = vmatprep.subr.mxu0 0.0
    %85 = vmatpush1.xpose.msra.mxu0 %v48
    %86 = vmatprep.subr.mxu0 0.0
    %87 = vmatpush1.xpose.msra.mxu0 %v45
    %88 = vmatprep.subr.mxu0 0.0
    %89 = vmatpush2.xpose.msra.mxu0 0.0
    %90 = vmatprep.subr.mxu0 0.0
    %91 = vmatpush2.xpose.msra.mxu0 0.0
    %92 = vmatprep.subr.mxu0 0.0
    %93 = vmatpush2.xpose.msra.mxu0 0.0
    %94 = vmatprep.subr.mxu0 0.0
    %95 = vmatpush2.xpose.msra.mxu0 0.0
    %96 = vmatprep.subr.mxu0 0.0
    %97 = vmatpush2.xpose.msra.mxu0 0.0
    %98 = vmatprep.subr.mxu0 0.0
    %99 = vmatpush2.xpose.msra.mxu0 0.0
    %100 = vmatprep.subr.mxu0 0.0
    %101 = vmatpush2.xpose.msra.mxu0 0.0
    %102 = vmatprep.subr.mxu0 0.0
    %103 = vmatpush2.xpose.msra.mxu0 0.0
    %104 = vmatprep.subr.mxu0 0.0
    %105 = vmatpush2.xpose.msra.mxu0 0.0
    %106 = vmatprep.subr.mxu0 0.0
    %107 = vmatpush2.xpose.msra.mxu0 0.0
    %108 = vmatprep.subr.mxu0 0.0
    %109 = vmatpush2.xpose.msra.mxu0 0.0
    %110 = vmatprep.subr.mxu0 0.0
    %111 = vmatpush2.xpose.msra.mxu0 0.0
    %112 = vmatprep.subr.mxu0 0.0
    %113 = vmatpush2.xpose.msra.mxu0 0.0
    %114 = vmatprep.subr.mxu0 0.0
    %115 = vmatpush2.xpose.msra.mxu0 0.0
    %116 = vmatprep.subr.mxu0 0.0
    %117 = vmatpush2.xpose.msra.mxu0 0.0
    %118 = vmatprep.subr.mxu0 0.0
    %119 = vmatpush2.xpose.msra.mxu0 0.0
    %120 = vmatprep.mubr.f32.mxu0 0.0
    %121 = vmatmul.mubr.f32.gmra.mxu0 %v39
    %v122 = vpop.f32.mrf.mxu0
    %v123 = vadd.f32 %v35, %v122
    %v124 = vpop.f32.mrf.mxu0
    %125 = vmatprep.mubr.f32.mxu0 0.0
    %126 = vmatmul.mubr.f32.gmra.mxu0 %v42
    %v127 = vpop.f32.mrf.mxu0
    %v128 = vadd.f32 %v35, %v127
    %v129 = vpop.f32.mrf.mxu0
    %130 = vdwg.mxu0
    %v131 = vld [vmem:[%s3] sm:$0xff]
    %v132 = vld [vmem:[%s3 + $0x8] sm:$0xff]
    %v133 = vld [vmem:[%s3 + $0x10] sm:$0xff]
    %v134 = vld [vmem:[%s3 + $0x18] sm:$0xff]
    %v135 = vld [vmem:[%s1] sm:$0xff]
    %vm136 = vcmask 261120
    %v138 = vsel %vm136, %v135, 0
    %v141 = vsel %vm136, %v131, 0
    %v144 = vsel %vm136, %v132, 0
    %v147 = vsel %vm136, %v133, 0
    %v150 = vsel %vm136, %v134, 0
    %152 = vmatprep.subr.mxu0 0.0
    %153 = vmatpush1.xpose.msra.mxu0 0.0
    %154 = vmatprep.subr.mxu0 0.0
    %155 = vmatpush1.xpose.msra.mxu0 0.0
    %156 = vmatprep.subr.mxu0 0.0
    %157 = vmatpush1.xpose.msra.mxu0 0.0
    %158 = vmatprep.subr.mxu0 0.0
    %159 = vmatpush1.xpose.msra.mxu0 0.0
    %160 = vmatprep.subr.mxu0 0.0
    %161 = vmatpush1.xpose.msra.mxu0 0.0
    %162 = vmatprep.subr.mxu0 0.0
    %163 = vmatpush1.xpose.msra.mxu0 0.0
    %164 = vmatprep.subr.mxu0 0.0
    %165 = vmatpush1.xpose.msra.mxu0 0.0
    %166 = vmatprep.subr.mxu0 0.0
    %167 = vmatpush1.xpose.msra.mxu0 0.0
    %168 = vmatprep.subr.mxu0 0.0
    %169 = vmatpush1.xpose.msra.mxu0 0.0
    %170 = vmatprep.subr.mxu0 0.0
    %171 = vmatpush1.xpose.msra.mxu0 0.0
    %172 = vmatprep.subr.mxu0 0.0
    %173 = vmatpush1.xpose.msra.mxu0 0.0
    %174 = vmatprep.subr.mxu0 0.0
    %175 = vmatpush1.xpose.msra.mxu0 0.0
    %176 = vmatprep.subr.mxu0 0.0
    %177 = vmatpush1.xpose.msra.mxu0 %v150
    %178 = vmatprep.subr.mxu0 0.0
    %179 = vmatpush1.xpose.msra.mxu0 %v147
    %180 = vmatprep.subr.mxu0 0.0
    %181 = vmatpush1.xpose.msra.mxu0 %v144
    %182 = vmatprep.subr.mxu0 0.0
    %183 = vmatpush1.xpose.msra.mxu0 %v141
    %184 = vmatprep.subr.mxu0 0.0
    %185 = vmatpush2.xpose.msra.mxu0 0.0
    %186 = vmatprep.subr.mxu0 0.0
    %187 = vmatpush2.xpose.msra.mxu0 0.0
    %188 = vmatprep.subr.mxu0 0.0
    %189 = vmatpush2.xpose.msra.mxu0 0.0
    %190 = vmatprep.subr.mxu0 0.0
    %191 = vmatpush2.xpose.msra.mxu0 0.0
    %192 = vmatprep.subr.mxu0 0.0
    %193 = vmatpush2.xpose.msra.mxu0 0.0
    %194 = vmatprep.subr.mxu0 0.0
    %195 = vmatpush2.xpose.msra.mxu0 0.0
    %196 = vmatprep.subr.mxu0 0.0
    %197 = vmatpush2.xpose.msra.mxu0 0.0
    %198 = vmatprep.subr.mxu0 0.0
    %199 = vmatpush2.xpose.msra.mxu0 0.0
    %200 = vmatprep.subr.mxu0 0.0
    %201 = vmatpush2.xpose.msra.mxu0 0.0
    %202 = vmatprep.subr.mxu0 0.0
    %203 = vmatpush2.xpose.msra.mxu0 0.0
    %204 = vmatprep.subr.mxu0 0.0
    %205 = vmatpush2.xpose.msra.mxu0 0.0
    %206 = vmatprep.subr.mxu0 0.0
    %207 = vmatpush2.xpose.msra.mxu0 0.0
    %208 = vmatprep.subr.mxu0 0.0
    %209 = vmatpush2.xpose.msra.mxu0 0.0
    %210 = vmatprep.subr.mxu0 0.0
    %211 = vmatpush2.xpose.msra.mxu0 0.0
    %212 = vmatprep.subr.mxu0 0.0
    %213 = vmatpush2.xpose.msra.mxu0 0.0
    %214 = vmatprep.subr.mxu0 0.0
    %215 = vmatpush2.xpose.msra.mxu0 0.0
    %216 = vmatprep.mubr.f32.mxu0 0.0
    %217 = vmatmul.mubr.f32.gmra.mxu0 %v138
    %v218 = vpop.f32.mrf.mxu0
    %v219 = vadd.f32 0.0, %v218
    %v220 = vpop.f32.mrf.mxu0
    %221 = vdwg.mxu0
    %v222 = vadd.f32 %v123, %v219
    %v223 = vtanh.pop %v222
    %224 = vst.msk [vmem:[#allocation2] sm:$0xff] %vm136, %v223
    %v226 = vsel %vm136, %v223, 0
    %228 = vmatprep.subr.mxu0 0.0
    %229 = vmatpush1.xpose.msra.mxu0 0.0
    %230 = vmatprep.subr.mxu0 0.0
    %231 = vmatpush1.xpose.msra.mxu0 0.0
    %232 = vmatprep.subr.mxu0 0.0
    %233 = vmatpush1.xpose.msra.mxu0 0.0
    %234 = vmatprep.subr.mxu0 0.0
    %235 = vmatpush1.xpose.msra.mxu0 0.0
    %236 = vmatprep.subr.mxu0 0.0
    %237 = vmatpush1.xpose.msra.mxu0 0.0
    %238 = vmatprep.subr.mxu0 0.0
    %239 = vmatpush1.xpose.msra.mxu0 0.0
    %240 = vmatprep.subr.mxu0 0.0
    %241 = vmatpush1.xpose.msra.mxu0 0.0
    %242 = vmatprep.subr.mxu0 0.0
    %243 = vmatpush1.xpose.msra.mxu0 0.0
    %244 = vmatprep.subr.mxu0 0.0
    %245 = vmatpush1.xpose.msra.mxu0 0.0
    %246 = vmatprep.subr.mxu0 0.0
    %247 = vmatpush1.xpose.msra.mxu0 0.0
    %248 = vmatprep.subr.mxu0 0.0
    %249 = vmatpush1.xpose.msra.mxu0 0.0
    %250 = vmatprep.subr.mxu0 0.0
    %251 = vmatpush1.xpose.msra.mxu0 0.0
    %252 = vmatprep.subr.mxu0 0.0
    %253 = vmatpush1.xpose.msra.mxu0 %v150
    %254 = vmatprep.subr.mxu0 0.0
    %255 = vmatpush1.xpose.msra.mxu0 %v147
    %256 = vmatprep.subr.mxu0 0.0
    %257 = vmatpush1.xpose.msra.mxu0 %v144
    %258 = vmatprep.subr.mxu0 0.0
    %259 = vmatpush1.xpose.msra.mxu0 %v141
    %260 = vmatprep.subr.mxu0 0.0
    %261 = vmatpush2.xpose.msra.mxu0 0.0
    %262 = vmatprep.subr.mxu0 0.0
    %263 = vmatpush2.xpose.msra.mxu0 0.0
    %264 = vmatprep.subr.mxu0 0.0
    %265 = vmatpush2.xpose.msra.mxu0 0.0
    %266 = vmatprep.subr.mxu0 0.0
    %267 = vmatpush2.xpose.msra.mxu0 0.0
    %268 = vmatprep.subr.mxu0 0.0
    %269 = vmatpush2.xpose.msra.mxu0 0.0
    %270 = vmatprep.subr.mxu0 0.0
    %271 = vmatpush2.xpose.msra.mxu0 0.0
    %272 = vmatprep.subr.mxu0 0.0
    %273 = vmatpush2.xpose.msra.mxu0 0.0
    %274 = vmatprep.subr.mxu0 0.0
    %275 = vmatpush2.xpose.msra.mxu0 0.0
    %276 = vmatprep.subr.mxu0 0.0
    %277 = vmatpush2.xpose.msra.mxu0 0.0
    %278 = vmatprep.subr.mxu0 0.0
    %279 = vmatpush2.xpose.msra.mxu0 0.0
    %280 = vmatprep.subr.mxu0 0.0
    %281 = vmatpush2.xpose.msra.mxu0 0.0
    %282 = vmatprep.subr.mxu0 0.0
    %283 = vmatpush2.xpose.msra.mxu0 0.0
    %284 = vmatprep.subr.mxu0 0.0
    %285 = vmatpush2.xpose.msra.mxu0 0.0
    %286 = vmatprep.subr.mxu0 0.0
    %287 = vmatpush2.xpose.msra.mxu0 0.0
    %288 = vmatprep.subr.mxu0 0.0
    %289 = vmatpush2.xpose.msra.mxu0 0.0
    %290 = vmatprep.subr.mxu0 0.0
    %291 = vmatpush2.xpose.msra.mxu0 0.0
    %292 = vmatprep.mubr.f32.mxu0 0.0
    %293 = vmatmul.mubr.f32.gmra.mxu0 %v226
    %v294 = vpop.f32.mrf.mxu0
    %v295 = vadd.f32 0.0, %v294
    %v296 = vpop.f32.mrf.mxu0
    %297 = vdwg.mxu0
    %v298 = vadd.f32 %v128, %v295
    %v299 = vtanh.pop %v298
    %s300 = scalar_lea.vmem [#allocation2], 8
    %301 = vst.msk [vmem:[%s300] sm:$0xff] %vm136, %v299
    %302 = vst.msk [vmem:[#allocation4] sm:$0xff] %vm136, %v299
    // Predicated region
    $region22: #{clean_basic_rnn_forward.1} parent=1 // pred_check
      _
    $region23: #{clean_basic_rnn_forward.1} parent=1 // pred_check_branch
      %304 = sbr.rel (0) target = $region25
    $region24: #{clean_basic_rnn_forward.1} parent=1 // pred_region
      %s306 = ssub.s32 256, 256
      %307 = vsyncadd [#allocation3], %s306
      %s308 = sshll.u32 [#allocation2], 4
      %s309 = int_to_ptr.vmem [resolvable:$true] %s308
      %314 = dma.vmem_to_hbm [thread:$0]  %s309, 256, %s5, [#allocation3], 128, 128, 8
    $region25: #{clean_basic_rnn_forward.1} parent=1 // pred_fallthru
      _
    // Predicated region
    $region26: #{clean_basic_rnn_forward.1} parent=1 // pred_check
      _
    $region27: #{clean_basic_rnn_forward.1} parent=1 // pred_check_branch
      %316 = sbr.rel (0) target = $region29
    $region28: #{clean_basic_rnn_forward.1} parent=1 // pred_region
      %s318 = ssub.s32 128, 128
      %319 = vsyncadd [#allocation5], %s318
      %s321 = sshll.u32 [#allocation4], 4
      %s322 = int_to_ptr.vmem [resolvable:$true] %s321
      %324 = dma.vmem_to_hbm [thread:$0]  %s322, 128, %s6, [#allocation5]
    $region29: #{clean_basic_rnn_forward.1} parent=1 // pred_fallthru
      _
    // Predicated region
    $region30: #{clean_basic_rnn_forward.1} parent=1 // pred_check
      _
    $region31: #{clean_basic_rnn_forward.1} parent=1 // pred_check_branch
      %326 = sbr.rel (0) target = $region33
    $region32: #{clean_basic_rnn_forward.1} parent=1 // pred_region
      %327 = dma.done [#allocation3], 256
    $region33: #{clean_basic_rnn_forward.1} parent=1 // pred_fallthru
      _
    // Predicated region
    $region34: #{clean_basic_rnn_forward.1} parent=1 // pred_check
      _
    $region35: #{clean_basic_rnn_forward.1} parent=1 // pred_check_branch
      %329 = sbr.rel (0) target = $region37
    $region36: #{clean_basic_rnn_forward.1} parent=1 // pred_region
      %330 = dma.done [#allocation5], 128
    $region37: #{clean_basic_rnn_forward.1} parent=1 // pred_fallthru
      _
    %331 = vsyncpa [#allocation3], 1
    %332 = vsyncpa [#allocation5], 1

</llo_original>
